<compile_context>
chip_gen: v6e
topology: v6e:2x2x1
jax: 0.10.0
libtpu: 0.0.40
codegen_flags: <defaults>
</compile_context>

<pallas_src>
import jax
import jax.numpy as jnp
from jax.experimental import pallas as pl
from jax.experimental.pallas import tpu as pltpu


def _normalize_kernel(img_ref, mean_ref, inv_std_ref, out_ref):
    # Compute in f32 regardless of input dtype; (r_tile, 1) parameter columns
    # broadcast across the lane axis on the VPU.
    x = img_ref[...].astype(jnp.float32)
    out_ref[...] = ((x - mean_ref[...]) * inv_std_ref[...]).astype(out_ref.dtype)


def _round_up(v, unit):
    return -(-v // unit) * unit


def _pick_lane_width(lanes_padded, max_lane_width=1024):
    """Largest divisor of lanes_padded that is a multiple of 128 and <= max_lane_width.

    lanes_padded is always a multiple of 128, so 128 is always a valid choice.
    """
    m = lanes_padded // 128
    best = 1
    for d in range(1, min(m, max_lane_width // 128) + 1):
        if m % d == 0:
            best = d
    return 128 * best


def _pick_row_tile(rows, lane_width, itemsize, sublane_unit, *,
                   budget_bytes=4 << 20,      # per-buffer cap (v7x-safe)
                   min_tile_bytes=1 << 20,    # amortize ~0.35us per grid step
                   target_blocks=8):          # pipeline / megacore occupancy
    """Rows per block: byte-budgeted, sublane-aligned, >= target_blocks steps
    when the data is large enough to benefit."""
    if rows <= sublane_unit:
        return rows
    row_bytes = lane_width * itemsize
    by_budget = max(sublane_unit,
                    (budget_bytes // row_bytes) // sublane_unit * sublane_unit)
    by_blocks = _round_up(max(1, -(-rows // target_blocks)), sublane_unit)
    by_minsize = _round_up(max(1, -(-min_tile_bytes // row_bytes)), sublane_unit)
    r_tile = min(by_budget, max(by_blocks, by_minsize))
    if r_tile >= rows:
        return rows
    return r_tile


def normalization_forward(img, mean, std):
    """img: (B, C, H, W); mean, std: (C,). Returns (img - mean)/std per channel."""
    B, C, H, W = img.shape
    R0, L0 = B * C, H * W
    itemsize = jnp.dtype(img.dtype).itemsize
    sublane_unit = 8 * max(1, 4 // itemsize)          # f32 -> 8, bf16 -> 16, int8 -> 32

    # Lane-dense layout: pad flattened spatial to a multiple of 128, then fold
    # spatial into rows so lane width is a modest multiple of 128 and rows fill
    # sublanes even when B*C is tiny.
    L_work = L0 if L0 % 128 == 0 else _round_up(L0, 128)
    pad = L_work - L0
    lane_width = _pick_lane_width(L_work)             # in [128, 1024]
    k = L_work // lane_width                          # spatial rows folded per channel
    R = R0 * k

    img2d = img.reshape(R0, L0)
    if pad:
        # TODO(synk): pad-and-slice copies the tensor once each way; a ragged
        # lane tail handled in-kernel would avoid that for non-128-multiple H*W.
        img2d = jnp.pad(img2d, ((0, 0), (0, pad)))
    img2d = img2d.reshape(R, lane_width)

    # Per-row parameter columns in f32 (exact reciprocal hoisted out of the
    # kernel). Row r of the folded view maps to channel (r // k) % C.
    mean_f32 = mean.astype(jnp.float32)
    inv_std_f32 = 1.0 / std.astype(jnp.float32)
    mean_col = jnp.tile(jnp.repeat(mean_f32, k), B).reshape(R, 1)
    inv_std_col = jnp.tile(jnp.repeat(inv_std_f32, k), B).reshape(R, 1)

    r_tile = _pick_row_tile(R, lane_width, itemsize, sublane_unit)
    grid = (pl.cdiv(R, r_tile),)

    out2d = pl.pallas_call(
        _normalize_kernel,
        out_shape=jax.ShapeDtypeStruct((R, lane_width), img.dtype),
        grid=grid,
        in_specs=[
            pl.BlockSpec((r_tile, lane_width), lambda i: (i, 0)),
            pl.BlockSpec((r_tile, 1), lambda i: (i, 0)),   # mean: row-indexed only
            pl.BlockSpec((r_tile, 1), lambda i: (i, 0)),   # 1/std: row-indexed only
        ],
        out_specs=pl.BlockSpec((r_tile, lane_width), lambda i: (i, 0)),
        compiler_params=pltpu.CompilerParams(
            dimension_semantics=("parallel",),
            vmem_limit_bytes=32 * 1024 * 1024,  # fits v5e/v6e/v7x; ~20 MiB actually used
        ),
    )(img2d, mean_col, inv_std_col)

    if pad:
        out2d = out2d.reshape(R0, L_work)[:, :L0]
    return out2d.reshape(B, C, H, W)


if __name__ == "__main__":
    # Standard ImageNet normalization constants (matches module __init__).
    mean = jnp.array([0.485, 0.456, 0.406], dtype=jnp.float32)
    std = jnp.array([0.229, 0.224, 0.225], dtype=jnp.float32)

    def _ref(x):
        return (x - mean.reshape(-1, 1, 1)) / std.reshape(-1, 1, 1)

    # Case 1: lane-aligned spatial size (H*W multiple of 128).
    img = jax.random.uniform(jax.random.PRNGKey(0), (2, 3, 16, 16), dtype=jnp.float32)
    out = jax.block_until_ready(normalization_forward(img, mean, std))
    assert out.shape == img.shape and out.dtype == img.dtype
    assert jnp.allclose(out, _ref(img), atol=1e-5, rtol=1e-5)

    # Case 2: non-128-multiple spatial size -> pad-and-slice path.
    img2 = jax.random.uniform(jax.random.PRNGKey(1), (2, 3, 12, 12), dtype=jnp.float32)
    out2 = jax.block_until_ready(normalization_forward(img2, mean, std))
    assert jnp.allclose(out2, _ref(img2), atol=1e-5, rtol=1e-5)

    # Case 3: larger lane-aligned size -> spatial folded into the row axis.
    img3 = jax.random.uniform(jax.random.PRNGKey(2), (1, 3, 64, 64), dtype=jnp.float32)
    out3 = jax.block_until_ready(normalization_forward(img3, mean, std))
    assert jnp.allclose(out3, _ref(img3), atol=1e-5, rtol=1e-5)

    print("KERNEL_OK")
</pallas_src>

<mosaic_0001>
module attributes {stable_mosaic.version = 11 : i64} {
  func.func @_normalize_kernel(%arg0: i32, %arg1: memref<6x256xf32, #tpu.memory_space<vmem>>, %arg2: memref<6x1xf32, #tpu.memory_space<vmem>>, %arg3: memref<6x1xf32, #tpu.memory_space<vmem>>, %arg4: memref<6x256xf32, #tpu.memory_space<vmem>>) attributes {dimension_semantics = [#tpu.dimension_semantics<parallel>], iteration_bounds = array<i64: 1>, scalar_prefetch = 0 : i64, scratch_operands = 0 : i64, tpu.core_type = #tpu.core_type<tc>, window_params = [{transform_indices = @transform_0, window_bounds = array<i64: 6, 256>}, {transform_indices = @transform_1, window_bounds = array<i64: 6, 1>}, {transform_indices = @transform_2, window_bounds = array<i64: 6, 1>}, {transform_indices = @transform_3, window_bounds = array<i64: 6, 256>}]} {
    %c0 = arith.constant 0 : index
    %c0_0 = arith.constant 0 : index
    %0 = vector.load %arg1[%c0, %c0_0] : memref<6x256xf32, #tpu.memory_space<vmem>>, vector<6x256xf32>
    %c0_1 = arith.constant 0 : index
    %c0_2 = arith.constant 0 : index
    %1 = vector.load %arg2[%c0_1, %c0_2] : memref<6x1xf32, #tpu.memory_space<vmem>>, vector<6x1xf32>
    %2 = vector.broadcast %1 : vector<6x1xf32> to vector<6x256xf32>
    %3 = arith.subf %0, %2 : vector<6x256xf32>
    %c0_3 = arith.constant 0 : index
    %c0_4 = arith.constant 0 : index
    %4 = vector.load %arg3[%c0_3, %c0_4] : memref<6x1xf32, #tpu.memory_space<vmem>>, vector<6x1xf32>
    %5 = vector.broadcast %4 : vector<6x1xf32> to vector<6x256xf32>
    %6 = arith.mulf %3, %5 : vector<6x256xf32>
    %c0_5 = arith.constant 0 : index
    %c0_6 = arith.constant 0 : index
    %7 = vector.load %arg4[%c0_5, %c0_6] : memref<6x256xf32, #tpu.memory_space<vmem>>, vector<6x256xf32>
    tpu.vector_store %arg4[%c0_5, %c0_6], %6 {strides = array<i32>} : memref<6x256xf32, #tpu.memory_space<vmem>>, vector<6x256xf32>,
    return
  }
  func.func @transform_0(%arg0: i32) -> (i32, i32) {
    %c0_i32 = arith.constant 0 : i32
    %c0_i32_0 = arith.constant 0 : i32
    return %arg0, %c0_i32 : i32, i32
  }
  func.func @transform_1(%arg0: i32) -> (i32, i32) {
    %c0_i32 = arith.constant 0 : i32
    %c0_i32_0 = arith.constant 0 : i32
    return %arg0, %c0_i32 : i32, i32
  }
  func.func @transform_2(%arg0: i32) -> (i32, i32) {
    %c0_i32 = arith.constant 0 : i32
    %c0_i32_0 = arith.constant 0 : i32
    return %arg0, %c0_i32 : i32, i32
  }
  func.func @transform_3(%arg0: i32) -> (i32, i32) {
    %c0_i32 = arith.constant 0 : i32
    %c0_i32_0 = arith.constant 0 : i32
    return %arg0, %c0_i32 : i32, i32
  }
}

</mosaic_0001>

<llo_original>
// kernel: tpu_custom_call.1
$region0: #{tpu_custom_call.1}
  #allocation0 [shape = 'u32[]', space=smem, size = 0x4, offset = 0x4, fixed_abs, tag = 'smem constant byte address 0x4 - core index']
  #allocation1 [shape = 'u32[144,128]{1,0:T(1,128)}', space=vmem, size = 0x12000, scoped, tag = 'internal scratch']
  %s0 = inlined_call_operand.vmem [shape: f32[6,256], index: 0, kind: input, shape index: {}]
  %s1 = inlined_call_operand.vmem [shape: f32[6,1], index: 1, kind: input, shape index: {}]
  %s2 = inlined_call_operand.vmem [shape: f32[6,1], index: 2, kind: input, shape index: {}]
  %s3 = inlined_call_operand.hbm [shape: f32[6,256], index: 3, kind: output, shape index: {}]
  %s4 = sld [smem:[#allocation0]]
  $region22: #{tpu_custom_call.1} parent=0
    _
  %s6 = ssub.s32 1, %s4
  %s7 = scalar_select 0, %s6, %s4
  $region1: #{tpu_custom_call.1} parent=0
    #allocation2 [shape = 'u8[8192]{0}', space=vmem, size = 0x2000, scoped, tag = 'output window, operand 0, single buffered']
    #allocation3 [shape = 's32[1]{0}', space=sflag, size = 0x4, scoped, tag = 'scoped memory for tpu_custom_call.1']
    %8 = vsyncpa [#allocation3], 0
    // Predicated region
    $region2: #{tpu_custom_call.1} parent=1 // pred_check
      _
    $region3: #{tpu_custom_call.1} parent=1 // pred_check_branch
      %10 = sbr.rel (0) target = $region5
    $region4: #{tpu_custom_call.1} parent=1 // pred_region
      _
    $region5: #{tpu_custom_call.1} parent=1 // pred_fallthru
      _
    // Predicated region
    $region6: #{tpu_custom_call.1} parent=1 // pred_check
      _
    $region7: #{tpu_custom_call.1} parent=1 // pred_check_branch
      %12 = sbr.rel (0) target = $region9
    $region8: #{tpu_custom_call.1} parent=1 // pred_region
      _
    $region9: #{tpu_custom_call.1} parent=1 // pred_fallthru
      _
    // Predicated region
    $region10: #{tpu_custom_call.1} parent=1 // pred_check
      _
    $region11: #{tpu_custom_call.1} parent=1 // pred_check_branch
      %14 = sbr.rel (0) target = $region13
    $region12: #{tpu_custom_call.1} parent=1 // pred_region
      _
    $region13: #{tpu_custom_call.1} parent=1 // pred_fallthru
      _
    %v15 = vld [vmem:[%s0] sm:$0x3f]
    %v16 = vld [vmem:[%s0 + $0x8] sm:$0x3f]
    %v17 = vld [vmem:[%s1] sm:$0x3f]
    %19 = vset.pattern.permute.xlu0 0
    %20 = vperm.xlu0 %19, %v17
    %v21 = vpop.permute.xlu0 %20
    %v23 = vsub.f32 %v15, %v21
    %v24 = vsub.f32 %v16, %v21
    %v25 = vld [vmem:[%s2] sm:$0x3f]
    %27 = vset.pattern.permute.xlu0 0
    %28 = vperm.xlu0 %27, %v25
    %v29 = vpop.permute.xlu0 %28
    %v31 = vmul.f32 %v23, %v29
    %v32 = vmul.f32 %v24, %v29
    %33 = vst [vmem:[#allocation2] sm:$0x3f] %v31
    %34 = vst [vmem:[#allocation2 + $0x8] sm:$0x3f] %v32
    // Predicated region
    $region14: #{tpu_custom_call.1} parent=1 // pred_check
      _
    $region15: #{tpu_custom_call.1} parent=1 // pred_check_branch
      %36 = sbr.rel (0) target = $region17
    $region16: #{tpu_custom_call.1} parent=1 // pred_region
      %s38 = ssub.s32 256, 256
      %39 = vsyncadd [#allocation3], %s38
      %s41 = sshll.u32 [#allocation2], 4
      %s42 = int_to_ptr.vmem [resolvable:$true] %s41
      %44 = dma.vmem_to_hbm [thread:$0]  %s42, 256, %s3, [#allocation3]
    $region17: #{tpu_custom_call.1} parent=1 // pred_fallthru
      _
    // Predicated region
    $region18: #{tpu_custom_call.1} parent=1 // pred_check
      _
    $region19: #{tpu_custom_call.1} parent=1 // pred_check_branch
      %46 = sbr.rel (0) target = $region21
    $region20: #{tpu_custom_call.1} parent=1 // pred_region
      %47 = dma.done [#allocation3], 256
    $region21: #{tpu_custom_call.1} parent=1 // pred_fallthru
      _
    %48 = vsyncpa [#allocation3], 1

</llo_original>
